<compile_context>
chip_gen: v5e
topology: v5e:2x2
jax: 0.10.0
libtpu: 0.0.40
codegen_flags: <defaults>
</compile_context>

<pallas_src>
import jax
import jax.numpy as jnp
from jax import lax
from jax.experimental import pallas as pl
from jax.experimental.pallas import tpu as pltpu


def _round_up(x, m):
    return ((x + m - 1) // m) * m


def cbow_kernel(idx_ref, emb_ref, wt_ref, bias_ref, out_ref, acc_ref):
    """One grid step = one vocab tile of the output projection.

    idx_ref : (B, C)        int32  SMEM (scalar-prefetched token ids)
    emb_ref : (Vp, Hp)      f32    VMEM (padded embedding table, resident)
    wt_ref  : (Hp, TV)      f32/bf16 VMEM (padded W^T tile for this vocab block)
    bias_ref: (1, TV)       f32    VMEM
    out_ref : (Bp, TV)      f32    VMEM
    acc_ref : (Bp, Hp)      f32    VMEM scratch (persists across grid steps)
    """
    B, C = idx_ref.shape
    Hp = acc_ref.shape[1]
    j = pl.program_id(0)

    # --- Embedding gather + context sum: computed once, reused by all tiles. ---
    @pl.when(j == 0)
    def _():
        acc_ref[...] = jnp.zeros_like(acc_ref)
        # B and C are tiny compile-time constants -> fully unrolled static
        # loops.  Each step: one scalar read from SMEM feeding a dynamic
        # (1, Hp) row slice of the embedding table.  No one-hot, no
        # counts @ emb matmul.
        for b in range(B):
            row = jnp.zeros((1, Hp), dtype=jnp.float32)
            for c in range(C):
                tok = idx_ref[b, c]                        # scalar from SMEM
                row = row + emb_ref[pl.ds(tok, 1), :]      # (1, Hp) row gather
            acc_ref[pl.ds(b, 1), :] = row

    # --- Output projection for this vocab tile (MXU), f32 accumulation. ---
    logits = jnp.dot(acc_ref[...].astype(wt_ref.dtype), wt_ref[...],
                     preferred_element_type=jnp.float32)
    out_ref[...] = logits + bias_ref[...]


def cbow_forward(inputs, emb, weight, bias, *, v_tile=128,
                 matmul_dtype=jnp.float32):
    """inputs: (B, C) int; emb: (V, H); weight: (V, H) nn.Linear layout; bias: (V,)."""
    B, C = inputs.shape
    V, H = emb.shape
    assert v_tile % 128 == 0

    Bp = _round_up(B, 8)        # sublane-aligned rows
    Hp = _round_up(H, 128)      # lane-dense hidden dim (matmul K)
    Vp = _round_up(V, v_tile)   # lane-dense vocab dim, tiled on the grid

    # Zero padding keeps semantics exact: padded hidden columns contribute 0
    # to the contraction; padded vocab columns are sliced off the output.
    emb_p = jnp.zeros((Vp, Hp), jnp.float32).at[:V, :H].set(
        emb.astype(jnp.float32))
    # NOTE: in a real module W^T (and the padding) would be cached once at
    # parameter-load time rather than redone per call; (Hp, Vp) keeps the
    # vocab dim on lanes so output stores are unmasked.
    w_t_p = jnp.zeros((Hp, Vp), matmul_dtype).at[:H, :V].set(
        weight.T.astype(matmul_dtype))
    bias_p = jnp.zeros((1, Vp), jnp.float32).at[0, :V].set(
        bias.astype(jnp.float32))
    idx = inputs.astype(jnp.int32)

    n_v_tiles = Vp // v_tile

    grid_spec = pltpu.PrefetchScalarGridSpec(
        num_scalar_prefetch=1,                  # idx -> SMEM, feeds the gather
        grid=(n_v_tiles,),
        in_specs=[
            # Full (padded) embedding table resident in VMEM; constant block
            # index -> DMA'd once.  For very large vocabularies switch to a
            # bf16 table or manual per-row HBM DMA instead.
            pl.BlockSpec((Vp, Hp), lambda j, idx_ref: (0, 0)),
            # W^T vocab tile, double-buffered across grid steps.
            pl.BlockSpec((Hp, v_tile), lambda j, idx_ref: (0, j)),
            pl.BlockSpec((1, v_tile), lambda j, idx_ref: (0, j)),
        ],
        out_specs=pl.BlockSpec((Bp, v_tile), lambda j, idx_ref: (0, j)),
        scratch_shapes=[pltpu.VMEM((Bp, Hp), jnp.float32)],
    )

    out_p = pl.pallas_call(
        cbow_kernel,
        out_shape=jax.ShapeDtypeStruct((Bp, Vp), jnp.float32),
        grid_spec=grid_spec,
        compiler_params=pltpu.CompilerParams(
            # The j==0 gather fills the accumulator reused by later vocab
            # tiles, so the vocab axis must run sequentially on one core.
            dimension_semantics=("arbitrary",),
        ),
    )(idx, emb_p, w_t_p, bias_p)

    return out_p[:B, :V]


def _reference(inputs, emb, weight, bias):
    summed = jnp.sum(emb[inputs], axis=1)
    return jnp.dot(summed, weight.T, precision=lax.Precision.HIGHEST) + bias


if __name__ == "__main__":
    key = jax.random.PRNGKey(0)

    # --- Config 1: shapes matching the original toy setup -------------------
    vocab_size, hidden_size, context, batch = 64, 32, 4, 8
    k_emb, k_w, k_b, k_idx, key = jax.random.split(key, 5)
    emb = jax.random.normal(k_emb, (vocab_size, hidden_size), dtype=jnp.float32)
    bound = 1.0 / jnp.sqrt(hidden_size)
    weight = jax.random.uniform(k_w, (vocab_size, hidden_size),
                                minval=-bound, maxval=bound, dtype=jnp.float32)
    bias = jax.random.uniform(k_b, (vocab_size,),
                              minval=-bound, maxval=bound, dtype=jnp.float32)
    inputs = jax.random.randint(k_idx, (batch, context), 0, vocab_size,
                                dtype=jnp.int32)

    out = jax.block_until_ready(cbow_forward(inputs, emb, weight, bias))
    ref = _reference(inputs, emb, weight, bias)
    assert out.shape == (batch, vocab_size)
    assert jnp.allclose(out, ref, atol=1e-3, rtol=1e-3)

    # --- Config 2: non-aligned shapes to exercise padding + multi-tile grid --
    vocab_size2, hidden_size2, context2, batch2 = 300, 50, 6, 5
    k_emb, k_w, k_b, k_idx, key = jax.random.split(key, 5)
    emb2 = jax.random.normal(k_emb, (vocab_size2, hidden_size2), dtype=jnp.float32)
    bound2 = 1.0 / jnp.sqrt(hidden_size2)
    weight2 = jax.random.uniform(k_w, (vocab_size2, hidden_size2),
                                 minval=-bound2, maxval=bound2, dtype=jnp.float32)
    bias2 = jax.random.uniform(k_b, (vocab_size2,),
                               minval=-bound2, maxval=bound2, dtype=jnp.float32)
    inputs2 = jax.random.randint(k_idx, (batch2, context2), 0, vocab_size2,
                                 dtype=jnp.int32)

    out2 = jax.block_until_ready(cbow_forward(inputs2, emb2, weight2, bias2))
    ref2 = _reference(inputs2, emb2, weight2, bias2)
    assert out2.shape == (batch2, vocab_size2)
    assert jnp.allclose(out2, ref2, atol=1e-3, rtol=1e-3)

    print("KERNEL_OK")
</pallas_src>

<mosaic_0001>
module attributes {stable_mosaic.version = 11 : i64} {
  func.func @cbow_kernel(%arg0: i32, %arg1: memref<8x4xi32, #tpu.memory_space<smem>>, %arg2: memref<128x128xf32, #tpu.memory_space<vmem>>, %arg3: memref<128x128xf32, #tpu.memory_space<vmem>>, %arg4: memref<1x128xf32, #tpu.memory_space<vmem>>, %arg5: memref<8x128xf32, #tpu.memory_space<vmem>>, %arg6: memref<8x128xf32, #tpu.memory_space<vmem>>) attributes {dimension_semantics = [#tpu.dimension_semantics<arbitrary>], iteration_bounds = array<i64: 1>, scalar_prefetch = 1 : i64, scratch_operands = 1 : i64, tpu.core_type = #tpu.core_type<tc>, window_params = [{pipeline_mode = #tpu.pipeline_mode<synchronous>, transform_indices = @transform_0, window_bounds = array<i64: 128, 128>}, {transform_indices = @transform_1, window_bounds = array<i64: 128, 128>}, {transform_indices = @transform_2, window_bounds = array<i64: 1, 128>}, {transform_indices = @transform_3, window_bounds = array<i64: 8, 128>}]} {
    %c0_i32 = arith.constant 0 : i32
    %0 = arith.cmpi eq, %arg0, %c0_i32 : i32
    %1 = arith.extui %0 : i1 to i32
    %c0_i32_0 = arith.constant 0 : i32
    %2 = arith.cmpi ne, %1, %c0_i32_0 : i32
    scf.if %2 {
      %cst_8 = arith.constant 0.000000e+00 : f32
      %10 = vector.broadcast %cst_8 : f32 to vector<8x128xf32>
      %c0_9 = arith.constant 0 : index
      %c0_10 = arith.constant 0 : index
      %11 = vector.load %arg6[%c0_9, %c0_10] : memref<8x128xf32, #tpu.memory_space<vmem>>, vector<8x128xf32>
      tpu.vector_store %arg6[%c0_9, %c0_10], %10 {strides = array<i32>} : memref<8x128xf32, #tpu.memory_space<vmem>>, vector<8x128xf32>,
      %cst_11 = arith.constant 0.000000e+00 : f32
      %12 = vector.broadcast %cst_11 : f32 to vector<1x128xf32>
      %c0_12 = arith.constant 0 : index
      %c0_13 = arith.constant 0 : index
      %13 = memref.load %arg1[%c0_12, %c0_13] : memref<8x4xi32, #tpu.memory_space<smem>>
      %14 = arith.index_cast %13 : i32 to index
      %c0_14 = arith.constant 0 : index
      %15 = vector.load %arg2[%14, %c0_14] : memref<128x128xf32, #tpu.memory_space<vmem>>, vector<1x128xf32>
      %16 = arith.addf %12, %15 : vector<1x128xf32>
      %c0_15 = arith.constant 0 : index
      %c1 = arith.constant 1 : index
      %17 = memref.load %arg1[%c0_15, %c1] : memref<8x4xi32, #tpu.memory_space<smem>>
      %18 = arith.index_cast %17 : i32 to index
      %c0_16 = arith.constant 0 : index
      %19 = vector.load %arg2[%18, %c0_16] : memref<128x128xf32, #tpu.memory_space<vmem>>, vector<1x128xf32>
      %20 = arith.addf %16, %19 : vector<1x128xf32>
      %c0_17 = arith.constant 0 : index
      %c2 = arith.constant 2 : index
      %21 = memref.load %arg1[%c0_17, %c2] : memref<8x4xi32, #tpu.memory_space<smem>>
      %22 = arith.index_cast %21 : i32 to index
      %c0_18 = arith.constant 0 : index
      %23 = vector.load %arg2[%22, %c0_18] : memref<128x128xf32, #tpu.memory_space<vmem>>, vector<1x128xf32>
      %24 = arith.addf %20, %23 : vector<1x128xf32>
      %c0_19 = arith.constant 0 : index
      %c3 = arith.constant 3 : index
      %25 = memref.load %arg1[%c0_19, %c3] : memref<8x4xi32, #tpu.memory_space<smem>>
      %26 = arith.index_cast %25 : i32 to index
      %c0_20 = arith.constant 0 : index
      %27 = vector.load %arg2[%26, %c0_20] : memref<128x128xf32, #tpu.memory_space<vmem>>, vector<1x128xf32>
      %28 = arith.addf %24, %27 : vector<1x128xf32>
      %c0_21 = arith.constant 0 : index
      %c0_22 = arith.constant 0 : index
      %29 = vector.load %arg6[%c0_21, %c0_22] : memref<8x128xf32, #tpu.memory_space<vmem>>, vector<1x128xf32>
      tpu.vector_store %arg6[%c0_21, %c0_22], %28 {strides = array<i32>} : memref<8x128xf32, #tpu.memory_space<vmem>>, vector<1x128xf32>,
      %cst_23 = arith.constant 0.000000e+00 : f32
      %30 = vector.broadcast %cst_23 : f32 to vector<1x128xf32>
      %c1_24 = arith.constant 1 : index
      %c0_25 = arith.constant 0 : index
      %31 = memref.load %arg1[%c1_24, %c0_25] : memref<8x4xi32, #tpu.memory_space<smem>>
      %32 = arith.index_cast %31 : i32 to index
      %c0_26 = arith.constant 0 : index
      %33 = vector.load %arg2[%32, %c0_26] : memref<128x128xf32, #tpu.memory_space<vmem>>, vector<1x128xf32>
      %34 = arith.addf %30, %33 : vector<1x128xf32>
      %c1_27 = arith.constant 1 : index
      %c1_28 = arith.constant 1 : index
      %35 = memref.load %arg1[%c1_27, %c1_28] : memref<8x4xi32, #tpu.memory_space<smem>>
      %36 = arith.index_cast %35 : i32 to index
      %c0_29 = arith.constant 0 : index
      %37 = vector.load %arg2[%36, %c0_29] : memref<128x128xf32, #tpu.memory_space<vmem>>, vector<1x128xf32>
      %38 = arith.addf %34, %37 : vector<1x128xf32>
      %c1_30 = arith.constant 1 : index
      %c2_31 = arith.constant 2 : index
      %39 = memref.load %arg1[%c1_30, %c2_31] : memref<8x4xi32, #tpu.memory_space<smem>>
      %40 = arith.index_cast %39 : i32 to index
      %c0_32 = arith.constant 0 : index
      %41 = vector.load %arg2[%40, %c0_32] : memref<128x128xf32, #tpu.memory_space<vmem>>, vector<1x128xf32>
      %42 = arith.addf %38, %41 : vector<1x128xf32>
      %c1_33 = arith.constant 1 : index
      %c3_34 = arith.constant 3 : index
      %43 = memref.load %arg1[%c1_33, %c3_34] : memref<8x4xi32, #tpu.memory_space<smem>>
      %44 = arith.index_cast %43 : i32 to index
      %c0_35 = arith.constant 0 : index
      %45 = vector.load %arg2[%44, %c0_35] : memref<128x128xf32, #tpu.memory_space<vmem>>, vector<1x128xf32>
      %46 = arith.addf %42, %45 : vector<1x128xf32>
      %c1_36 = arith.constant 1 : index
      %c0_37 = arith.constant 0 : index
      %47 = vector.load %arg6[%c1_36, %c0_37] : memref<8x128xf32, #tpu.memory_space<vmem>>, vector<1x128xf32>
      tpu.vector_store %arg6[%c1_36, %c0_37], %46 {strides = array<i32>} : memref<8x128xf32, #tpu.memory_space<vmem>>, vector<1x128xf32>,
      %cst_38 = arith.constant 0.000000e+00 : f32
      %48 = vector.broadcast %cst_38 : f32 to vector<1x128xf32>
      %c2_39 = arith.constant 2 : index
      %c0_40 = arith.constant 0 : index
      %49 = memref.load %arg1[%c2_39, %c0_40] : memref<8x4xi32, #tpu.memory_space<smem>>
      %50 = arith.index_cast %49 : i32 to index
      %c0_41 = arith.constant 0 : index
      %51 = vector.load %arg2[%50, %c0_41] : memref<128x128xf32, #tpu.memory_space<vmem>>, vector<1x128xf32>
      %52 = arith.addf %48, %51 : vector<1x128xf32>
      %c2_42 = arith.constant 2 : index
      %c1_43 = arith.constant 1 : index
      %53 = memref.load %arg1[%c2_42, %c1_43] : memref<8x4xi32, #tpu.memory_space<smem>>
      %54 = arith.index_cast %53 : i32 to index
      %c0_44 = arith.constant 0 : index
      %55 = vector.load %arg2[%54, %c0_44] : memref<128x128xf32, #tpu.memory_space<vmem>>, vector<1x128xf32>
      %56 = arith.addf %52, %55 : vector<1x128xf32>
      %c2_45 = arith.constant 2 : index
      %c2_46 = arith.constant 2 : index
      %57 = memref.load %arg1[%c2_45, %c2_46] : memref<8x4xi32, #tpu.memory_space<smem>>
      %58 = arith.index_cast %57 : i32 to index
      %c0_47 = arith.constant 0 : index
      %59 = vector.load %arg2[%58, %c0_47] : memref<128x128xf32, #tpu.memory_space<vmem>>, vector<1x128xf32>
      %60 = arith.addf %56, %59 : vector<1x128xf32>
      %c2_48 = arith.constant 2 : index
      %c3_49 = arith.constant 3 : index
      %61 = memref.load %arg1[%c2_48, %c3_49] : memref<8x4xi32, #tpu.memory_space<smem>>
      %62 = arith.index_cast %61 : i32 to index
      %c0_50 = arith.constant 0 : index
      %63 = vector.load %arg2[%62, %c0_50] : memref<128x128xf32, #tpu.memory_space<vmem>>, vector<1x128xf32>
      %64 = arith.addf %60, %63 : vector<1x128xf32>
      %c2_51 = arith.constant 2 : index
      %c0_52 = arith.constant 0 : index
      %65 = vector.load %arg6[%c2_51, %c0_52] : memref<8x128xf32, #tpu.memory_space<vmem>>, vector<1x128xf32>
      tpu.vector_store %arg6[%c2_51, %c0_52], %64 {strides = array<i32>} : memref<8x128xf32, #tpu.memory_space<vmem>>, vector<1x128xf32>,
      %cst_53 = arith.constant 0.000000e+00 : f32
      %66 = vector.broadcast %cst_53 : f32 to vector<1x128xf32>
      %c3_54 = arith.constant 3 : index
      %c0_55 = arith.constant 0 : index
      %67 = memref.load %arg1[%c3_54, %c0_55] : memref<8x4xi32, #tpu.memory_space<smem>>
      %68 = arith.index_cast %67 : i32 to index
      %c0_56 = arith.constant 0 : index
      %69 = vector.load %arg2[%68, %c0_56] : memref<128x128xf32, #tpu.memory_space<vmem>>, vector<1x128xf32>
      %70 = arith.addf %66, %69 : vector<1x128xf32>
      %c3_57 = arith.constant 3 : index
      %c1_58 = arith.constant 1 : index
      %71 = memref.load %arg1[%c3_57, %c1_58] : memref<8x4xi32, #tpu.memory_space<smem>>
      %72 = arith.index_cast %71 : i32 to index
      %c0_59 = arith.constant 0 : index
      %73 = vector.load %arg2[%72, %c0_59] : memref<128x128xf32, #tpu.memory_space<vmem>>, vector<1x128xf32>
      %74 = arith.addf %70, %73 : vector<1x128xf32>
      %c3_60 = arith.constant 3 : index
      %c2_61 = arith.constant 2 : index
      %75 = memref.load %arg1[%c3_60, %c2_61] : memref<8x4xi32, #tpu.memory_space<smem>>
      %76 = arith.index_cast %75 : i32 to index
      %c0_62 = arith.constant 0 : index
      %77 = vector.load %arg2[%76, %c0_62] : memref<128x128xf32, #tpu.memory_space<vmem>>, vector<1x128xf32>
      %78 = arith.addf %74, %77 : vector<1x128xf32>
      %c3_63 = arith.constant 3 : index
      %c3_64 = arith.constant 3 : index
      %79 = memref.load %arg1[%c3_63, %c3_64] : memref<8x4xi32, #tpu.memory_space<smem>>
      %80 = arith.index_cast %79 : i32 to index
      %c0_65 = arith.constant 0 : index
      %81 = vector.load %arg2[%80, %c0_65] : memref<128x128xf32, #tpu.memory_space<vmem>>, vector<1x128xf32>
      %82 = arith.addf %78, %81 : vector<1x128xf32>
      %c3_66 = arith.constant 3 : index
      %c0_67 = arith.constant 0 : index
      %83 = vector.load %arg6[%c3_66, %c0_67] : memref<8x128xf32, #tpu.memory_space<vmem>>, vector<1x128xf32>
      tpu.vector_store %arg6[%c3_66, %c0_67], %82 {strides = array<i32>} : memref<8x128xf32, #tpu.memory_space<vmem>>, vector<1x128xf32>,
      %cst_68 = arith.constant 0.000000e+00 : f32
      %84 = vector.broadcast %cst_68 : f32 to vector<1x128xf32>
      %c4 = arith.constant 4 : index
      %c0_69 = arith.constant 0 : index
      %85 = memref.load %arg1[%c4, %c0_69] : memref<8x4xi32, #tpu.memory_space<smem>>
      %86 = arith.index_cast %85 : i32 to index
      %c0_70 = arith.constant 0 : index
      %87 = vector.load %arg2[%86, %c0_70] : memref<128x128xf32, #tpu.memory_space<vmem>>, vector<1x128xf32>
      %88 = arith.addf %84, %87 : vector<1x128xf32>
      %c4_71 = arith.constant 4 : index
      %c1_72 = arith.constant 1 : index
      %89 = memref.load %arg1[%c4_71, %c1_72] : memref<8x4xi32, #tpu.memory_space<smem>>
      %90 = arith.index_cast %89 : i32 to index
      %c0_73 = arith.constant 0 : index
      %91 = vector.load %arg2[%90, %c0_73] : memref<128x128xf32, #tpu.memory_space<vmem>>, vector<1x128xf32>
      %92 = arith.addf %88, %91 : vector<1x128xf32>
      %c4_74 = arith.constant 4 : index
      %c2_75 = arith.constant 2 : index
      %93 = memref.load %arg1[%c4_74, %c2_75] : memref<8x4xi32, #tpu.memory_space<smem>>
      %94 = arith.index_cast %93 : i32 to index
      %c0_76 = arith.constant 0 : index
      %95 = vector.load %arg2[%94, %c0_76] : memref<128x128xf32, #tpu.memory_space<vmem>>, vector<1x128xf32>
      %96 = arith.addf %92, %95 : vector<1x128xf32>
      %c4_77 = arith.constant 4 : index
      %c3_78 = arith.constant 3 : index
      %97 = memref.load %arg1[%c4_77, %c3_78] : memref<8x4xi32, #tpu.memory_space<smem>>
      %98 = arith.index_cast %97 : i32 to index
      %c0_79 = arith.constant 0 : index
      %99 = vector.load %arg2[%98, %c0_79] : memref<128x128xf32, #tpu.memory_space<vmem>>, vector<1x128xf32>
      %100 = arith.addf %96, %99 : vector<1x128xf32>
      %c4_80 = arith.constant 4 : index
      %c0_81 = arith.constant 0 : index
      %101 = vector.load %arg6[%c4_80, %c0_81] : memref<8x128xf32, #tpu.memory_space<vmem>>, vector<1x128xf32>
      tpu.vector_store %arg6[%c4_80, %c0_81], %100 {strides = array<i32>} : memref<8x128xf32, #tpu.memory_space<vmem>>, vector<1x128xf32>,
      %cst_82 = arith.constant 0.000000e+00 : f32
      %102 = vector.broadcast %cst_82 : f32 to vector<1x128xf32>
      %c5 = arith.constant 5 : index
      %c0_83 = arith.constant 0 : index
      %103 = memref.load %arg1[%c5, %c0_83] : memref<8x4xi32, #tpu.memory_space<smem>>
      %104 = arith.index_cast %103 : i32 to index
      %c0_84 = arith.constant 0 : index
      %105 = vector.load %arg2[%104, %c0_84] : memref<128x128xf32, #tpu.memory_space<vmem>>, vector<1x128xf32>
      %106 = arith.addf %102, %105 : vector<1x128xf32>
      %c5_85 = arith.constant 5 : index
      %c1_86 = arith.constant 1 : index
      %107 = memref.load %arg1[%c5_85, %c1_86] : memref<8x4xi32, #tpu.memory_space<smem>>
      %108 = arith.index_cast %107 : i32 to index
      %c0_87 = arith.constant 0 : index
      %109 = vector.load %arg2[%108, %c0_87] : memref<128x128xf32, #tpu.memory_space<vmem>>, vector<1x128xf32>
      %110 = arith.addf %106, %109 : vector<1x128xf32>
      %c5_88 = arith.constant 5 : index
      %c2_89 = arith.constant 2 : index
      %111 = memref.load %arg1[%c5_88, %c2_89] : memref<8x4xi32, #tpu.memory_space<smem>>
      %112 = arith.index_cast %111 : i32 to index
      %c0_90 = arith.constant 0 : index
      %113 = vector.load %arg2[%112, %c0_90] : memref<128x128xf32, #tpu.memory_space<vmem>>, vector<1x128xf32>
      %114 = arith.addf %110, %113 : vector<1x128xf32>
      %c5_91 = arith.constant 5 : index
      %c3_92 = arith.constant 3 : index
      %115 = memref.load %arg1[%c5_91, %c3_92] : memref<8x4xi32, #tpu.memory_space<smem>>
      %116 = arith.index_cast %115 : i32 to index
      %c0_93 = arith.constant 0 : index
      %117 = vector.load %arg2[%116, %c0_93] : memref<128x128xf32, #tpu.memory_space<vmem>>, vector<1x128xf32>
      %118 = arith.addf %114, %117 : vector<1x128xf32>
      %c5_94 = arith.constant 5 : index
      %c0_95 = arith.constant 0 : index
      %119 = vector.load %arg6[%c5_94, %c0_95] : memref<8x128xf32, #tpu.memory_space<vmem>>, vector<1x128xf32>
      tpu.vector_store %arg6[%c5_94, %c0_95], %118 {strides = array<i32>} : memref<8x128xf32, #tpu.memory_space<vmem>>, vector<1x128xf32>,
      %cst_96 = arith.constant 0.000000e+00 : f32
      %120 = vector.broadcast %cst_96 : f32 to vector<1x128xf32>
      %c6 = arith.constant 6 : index
      %c0_97 = arith.constant 0 : index
      %121 = memref.load %arg1[%c6, %c0_97] : memref<8x4xi32, #tpu.memory_space<smem>>
      %122 = arith.index_cast %121 : i32 to index
      %c0_98 = arith.constant 0 : index
      %123 = vector.load %arg2[%122, %c0_98] : memref<128x128xf32, #tpu.memory_space<vmem>>, vector<1x128xf32>
      %124 = arith.addf %120, %123 : vector<1x128xf32>
      %c6_99 = arith.constant 6 : index
      %c1_100 = arith.constant 1 : index
      %125 = memref.load %arg1[%c6_99, %c1_100] : memref<8x4xi32, #tpu.memory_space<smem>>
      %126 = arith.index_cast %125 : i32 to index
      %c0_101 = arith.constant 0 : index
      %127 = vector.load %arg2[%126, %c0_101] : memref<128x128xf32, #tpu.memory_space<vmem>>, vector<1x128xf32>
      %128 = arith.addf %124, %127 : vector<1x128xf32>
      %c6_102 = arith.constant 6 : index
      %c2_103 = arith.constant 2 : index
      %129 = memref.load %arg1[%c6_102, %c2_103] : memref<8x4xi32, #tpu.memory_space<smem>>
      %130 = arith.index_cast %129 : i32 to index
      %c0_104 = arith.constant 0 : index
      %131 = vector.load %arg2[%130, %c0_104] : memref<128x128xf32, #tpu.memory_space<vmem>>, vector<1x128xf32>
      %132 = arith.addf %128, %131 : vector<1x128xf32>
      %c6_105 = arith.constant 6 : index
      %c3_106 = arith.constant 3 : index
      %133 = memref.load %arg1[%c6_105, %c3_106] : memref<8x4xi32, #tpu.memory_space<smem>>
      %134 = arith.index_cast %133 : i32 to index
      %c0_107 = arith.constant 0 : index
      %135 = vector.load %arg2[%134, %c0_107] : memref<128x128xf32, #tpu.memory_space<vmem>>, vector<1x128xf32>
      %136 = arith.addf %132, %135 : vector<1x128xf32>
      %c6_108 = arith.constant 6 : index
      %c0_109 = arith.constant 0 : index
      %137 = vector.load %arg6[%c6_108, %c0_109] : memref<8x128xf32, #tpu.memory_space<vmem>>, vector<1x128xf32>
      tpu.vector_store %arg6[%c6_108, %c0_109], %136 {strides = array<i32>} : memref<8x128xf32, #tpu.memory_space<vmem>>, vector<1x128xf32>,
      %cst_110 = arith.constant 0.000000e+00 : f32
      %138 = vector.broadcast %cst_110 : f32 to vector<1x128xf32>
      %c7 = arith.constant 7 : index
      %c0_111 = arith.constant 0 : index
      %139 = memref.load %arg1[%c7, %c0_111] : memref<8x4xi32, #tpu.memory_space<smem>>
      %140 = arith.index_cast %139 : i32 to index
      %c0_112 = arith.constant 0 : index
      %141 = vector.load %arg2[%140, %c0_112] : memref<128x128xf32, #tpu.memory_space<vmem>>, vector<1x128xf32>
      %142 = arith.addf %138, %141 : vector<1x128xf32>
      %c7_113 = arith.constant 7 : index
      %c1_114 = arith.constant 1 : index
      %143 = memref.load %arg1[%c7_113, %c1_114] : memref<8x4xi32, #tpu.memory_space<smem>>
      %144 = arith.index_cast %143 : i32 to index
      %c0_115 = arith.constant 0 : index
      %145 = vector.load %arg2[%144, %c0_115] : memref<128x128xf32, #tpu.memory_space<vmem>>, vector<1x128xf32>
      %146 = arith.addf %142, %145 : vector<1x128xf32>
      %c7_116 = arith.constant 7 : index
      %c2_117 = arith.constant 2 : index
      %147 = memref.load %arg1[%c7_116, %c2_117] : memref<8x4xi32, #tpu.memory_space<smem>>
      %148 = arith.index_cast %147 : i32 to index
      %c0_118 = arith.constant 0 : index
      %149 = vector.load %arg2[%148, %c0_118] : memref<128x128xf32, #tpu.memory_space<vmem>>, vector<1x128xf32>
      %150 = arith.addf %146, %149 : vector<1x128xf32>
      %c7_119 = arith.constant 7 : index
      %c3_120 = arith.constant 3 : index
      %151 = memref.load %arg1[%c7_119, %c3_120] : memref<8x4xi32, #tpu.memory_space<smem>>
      %152 = arith.index_cast %151 : i32 to index
      %c0_121 = arith.constant 0 : index
      %153 = vector.load %arg2[%152, %c0_121] : memref<128x128xf32, #tpu.memory_space<vmem>>, vector<1x128xf32>
      %154 = arith.addf %150, %153 : vector<1x128xf32>
      %c7_122 = arith.constant 7 : index
      %c0_123 = arith.constant 0 : index
      %155 = vector.load %arg6[%c7_122, %c0_123] : memref<8x128xf32, #tpu.memory_space<vmem>>, vector<1x128xf32>
      tpu.vector_store %arg6[%c7_122, %c0_123], %154 {strides = array<i32>} : memref<8x128xf32, #tpu.memory_space<vmem>>, vector<1x128xf32>,
    } else {
    }
    %c0 = arith.constant 0 : index
    %c0_1 = arith.constant 0 : index
    %3 = vector.load %arg6[%c0, %c0_1] : memref<8x128xf32, #tpu.memory_space<vmem>>, vector<8x128xf32>
    %c0_2 = arith.constant 0 : index
    %c0_3 = arith.constant 0 : index
    %4 = vector.load %arg3[%c0_2, %c0_3] : memref<128x128xf32, #tpu.memory_space<vmem>>, vector<128x128xf32>
    %cst = arith.constant dense<0.000000e+00> : vector<8x128xf32>
    %5 = tpu.matmul %3, %4, %cst {dimension_numbers = #tpu.dot_dimension_numbers<[1], [0], [0], [1], [0, 0, 1, 1], [], []>} : vector<8x128xf32>, vector<128x128xf32>, vector<8x128xf32> -> vector<8x128xf32>
    %c0_4 = arith.constant 0 : index
    %c0_5 = arith.constant 0 : index
    %6 = vector.load %arg4[%c0_4, %c0_5] : memref<1x128xf32, #tpu.memory_space<vmem>>, vector<1x128xf32>
    %7 = vector.broadcast %6 : vector<1x128xf32> to vector<8x128xf32>
    %8 = arith.addf %5, %7 : vector<8x128xf32>
    %c0_6 = arith.constant 0 : index
    %c0_7 = arith.constant 0 : index
    %9 = vector.load %arg5[%c0_6, %c0_7] : memref<8x128xf32, #tpu.memory_space<vmem>>, vector<8x128xf32>
    tpu.vector_store %arg5[%c0_6, %c0_7], %8 {strides = array<i32>} : memref<8x128xf32, #tpu.memory_space<vmem>>, vector<8x128xf32>,
    return
  }
  func.func @transform_0(%arg0: i32, %arg1: memref<8x4xi32, #tpu.memory_space<smem>>) -> (i32, i32) {
    %c0_i32 = arith.constant 0 : i32
    %c0_i32_0 = arith.constant 0 : i32
    %c0_i32_1 = arith.constant 0 : i32
    return %c0_i32, %c0_i32_0 : i32, i32
  }
  func.func @transform_1(%arg0: i32, %arg1: memref<8x4xi32, #tpu.memory_space<smem>>) -> (i32, i32) {
    %c0_i32 = arith.constant 0 : i32
    %c0_i32_0 = arith.constant 0 : i32
    return %c0_i32, %arg0 : i32, i32
  }
  func.func @transform_2(%arg0: i32, %arg1: memref<8x4xi32, #tpu.memory_space<smem>>) -> (i32, i32) {
    %c0_i32 = arith.constant 0 : i32
    %c0_i32_0 = arith.constant 0 : i32
    return %c0_i32, %arg0 : i32, i32
  }
  func.func @transform_3(%arg0: i32, %arg1: memref<8x4xi32, #tpu.memory_space<smem>>) -> (i32, i32) {
    %c0_i32 = arith.constant 0 : i32
    %c0_i32_0 = arith.constant 0 : i32
    return %c0_i32, %arg0 : i32, i32
  }
}

</mosaic_0001>

<llo_original>
// kernel: tpu_custom_call.1
$region0: #{tpu_custom_call.1}
  #allocation0 [shape = 'u32[]', space=smem, size = 0x4, offset = 0x4, fixed_abs, tag = 'smem constant byte address 0x4 - core index']
  #allocation1 [shape = 'u32[72,128]{1,0:T(1,128)}', space=vmem, size = 0x9000, scoped, tag = 'internal scratch']
  #allocation2 [shape = 'f32[8,128]{1,0:T(8,128)}', space=vmem, size = 0x1000, scoped, tag = 'scratch operand']
  #allocation3 [shape = 's32[1]{0}', space=sflag, size = 0x4, scoped, tag = 'scoped memory for tpu_custom_call.1']
  #allocation4 [shape = 'u8[4096]{0}', space=smem, size = 0x1000, scoped, tag = 'prefetched SMEM operand 0']
  %s0 = inlined_call_operand.vmem [shape: s32[8,4], index: 0, kind: input, shape index: {}]
  %s1 = inlined_call_operand.hbm [shape: f32[128,128], index: 1, kind: input, shape index: {}]
  %s2 = inlined_call_operand.hbm [shape: f32[128,128], index: 2, kind: input, shape index: {}]
  %s3 = inlined_call_operand.vmem [shape: f32[1,128], index: 3, kind: input, shape index: {}]
  %s4 = inlined_call_operand.hbm [shape: f32[8,128], index: 4, kind: output, shape index: {}]
  %s5 = sld [smem:[#allocation0]]
  $region34: #{tpu_custom_call.1} parent=0
    _
  %s7 = ssub.s32 1, %s5
  %s8 = scalar_select 0, %s7, %s5
  %s10 = sshll.u32 %s0, 4
  %s11 = int_to_ptr.vmem [resolvable:$true] %s10
  %13 = dma.vmem_to_smem %s11, 128, [#allocation4], [#allocation3]
  %15 = dma.done [#allocation3], 128
  %16 = sfence
  $region1: #{tpu_custom_call.1} parent=0
    #allocation5 [shape = 'u8[65536]{0}', space=vmem, size = 0x10000, scoped, tag = 'input window, operand 1, single buffered']
    #allocation6 [shape = 's32[1]{0}', space=sflag, size = 0x4, scoped, tag = 'scoped memory for tpu_custom_call.1']
    #allocation7 [shape = 's32[1]{0}', space=sflag, size = 0x4, scoped, tag = 'scoped memory for tpu_custom_call.1']
    #allocation8 [shape = 'u8[65536]{0}', space=vmem, size = 0x10000, scoped, tag = 'input window, operand 2, single buffered']
    #allocation9 [shape = 's32[1]{0}', space=sflag, size = 0x4, scoped, tag = 'scoped memory for tpu_custom_call.1']
    #allocation10 [shape = 'u8[4096]{0}', space=vmem, size = 0x1000, scoped, tag = 'output window, operand 0, single buffered']
    %17 = vsyncpa [#allocation6], 0
    %18 = vsyncpa [#allocation9], 0
    %19 = vsyncpa [#allocation7], 0
    // Predicated region
    $region2: #{tpu_custom_call.1} parent=1 // pred_check
      _
    $region3: #{tpu_custom_call.1} parent=1 // pred_check_branch
      %21 = sbr.rel (0) target = $region5
    $region4: #{tpu_custom_call.1} parent=1 // pred_region
      %23 = vsyncadd [#allocation6], 0
      %s24 = sshll.u32 %s1, 4
      %s25 = int_to_ptr.hbm [resolvable:$true] %s24
      %s26 = sshll.u32 [#allocation5], 4
      %s27 = int_to_ptr.vmem [resolvable:$true] %s26
      %32 = dma.hbm_to_vmem [thread:$0]  %s25, 2048, %s27, [#allocation6], 128, 128, 8
    $region5: #{tpu_custom_call.1} parent=1 // pred_fallthru
      _
    // Predicated region
    $region6: #{tpu_custom_call.1} parent=1 // pred_check
      _
    $region7: #{tpu_custom_call.1} parent=1 // pred_check_branch
      %34 = sbr.rel (0) target = $region9
    $region8: #{tpu_custom_call.1} parent=1 // pred_region
      %36 = vsyncadd [#allocation9], 0
      %s37 = sshll.u32 %s2, 4
      %s38 = int_to_ptr.hbm [resolvable:$true] %s37
      %s39 = sshll.u32 [#allocation8], 4
      %s40 = int_to_ptr.vmem [resolvable:$true] %s39
      %45 = dma.hbm_to_vmem [thread:$0]  %s38, 2048, %s40, [#allocation9], 128, 128, 8
    $region9: #{tpu_custom_call.1} parent=1 // pred_fallthru
      _
    // Predicated region
    $region10: #{tpu_custom_call.1} parent=1 // pred_check
      _
    $region11: #{tpu_custom_call.1} parent=1 // pred_check_branch
      %47 = sbr.rel (0) target = $region13
    $region12: #{tpu_custom_call.1} parent=1 // pred_region
      _
    $region13: #{tpu_custom_call.1} parent=1 // pred_fallthru
      _
    // Predicated region
    $region14: #{tpu_custom_call.1} parent=1 // pred_check
      _
    $region15: #{tpu_custom_call.1} parent=1 // pred_check_branch
      %49 = sbr.rel (0) target = $region17
    $region16: #{tpu_custom_call.1} parent=1 // pred_region
      %51 = dma.done [#allocation6], 2048
    $region17: #{tpu_custom_call.1} parent=1 // pred_fallthru
      _
    // Predicated region
    $region18: #{tpu_custom_call.1} parent=1 // pred_check
      _
    $region19: #{tpu_custom_call.1} parent=1 // pred_check_branch
      %53 = sbr.rel (0) target = $region21
    $region20: #{tpu_custom_call.1} parent=1 // pred_region
      %55 = dma.done [#allocation9], 2048
    $region21: #{tpu_custom_call.1} parent=1 // pred_fallthru
      _
    %p56 = scmp.eq.s32.totalorder 0, 0
    // Predicated region
    $region22: #{tpu_custom_call.1} parent=1 // pred_check
      %p57 = pneg %p56
    $region23: #{tpu_custom_call.1} parent=1 // pred_check_branch
      %59 = sbr.rel (%p57) target = $region25
    $region24: #{tpu_custom_call.1} parent=1 // pred_region
      %60 = vst [vmem:[#allocation2] sm:$0xff] 0.0
      %s61 = sld [smem:[#allocation4]]
      %s62 = scalar_lea.vmem [#allocation5], %s61
      %v63 = vld [vmem:[%s62] sm:$0x1]
      %v64 = vadd.f32 %v63, 0.0
      %s65 = sld [smem:[#allocation4 + $0x1]]
      %s66 = scalar_lea.vmem [#allocation5], %s65
      %v67 = vld [vmem:[%s66] sm:$0x1]
      %v68 = vadd.f32 %v64, %v67
      %s69 = sld [smem:[#allocation4 + $0x2]]
      %s70 = scalar_lea.vmem [#allocation5], %s69
      %v71 = vld [vmem:[%s70] sm:$0x1]
      %v72 = vadd.f32 %v68, %v71
      %s73 = sld [smem:[#allocation4 + $0x3]]
      %s74 = scalar_lea.vmem [#allocation5], %s73
      %v75 = vld [vmem:[%s74] sm:$0x1]
      %v76 = vadd.f32 %v72, %v75
      %77 = vst [vmem:[#allocation2] sm:$0x1] %v76
      %s78 = sld [smem:[#allocation4 + $0x80]]
      %s79 = scalar_lea.vmem [#allocation5], %s78
      %v80 = vld [vmem:[%s79] sm:$0x1]
      %v81 = vadd.f32 %v80, 0.0
      %s82 = sld [smem:[#allocation4 + $0x81]]
      %s83 = scalar_lea.vmem [#allocation5], %s82
      %v84 = vld [vmem:[%s83] sm:$0x1]
      %v85 = vadd.f32 %v81, %v84
      %s86 = sld [smem:[#allocation4 + $0x82]]
      %s87 = scalar_lea.vmem [#allocation5], %s86
      %v88 = vld [vmem:[%s87] sm:$0x1]
      %v89 = vadd.f32 %v85, %v88
      %s90 = sld [smem:[#allocation4 + $0x83]]
      %s91 = scalar_lea.vmem [#allocation5], %s90
      %v92 = vld [vmem:[%s91] sm:$0x1]
      %v93 = vadd.f32 %v89, %v92
      %94 = vst [vmem:[#allocation2 + $0x1] sm:$0x1] %v93
      %s95 = sld [smem:[#allocation4 + $0x100]]
      %s96 = scalar_lea.vmem [#allocation5], %s95
      %v97 = vld [vmem:[%s96] sm:$0x1]
      %v98 = vadd.f32 %v97, 0.0
      %s99 = sld [smem:[#allocation4 + $0x101]]
      %s100 = scalar_lea.vmem [#allocation5], %s99
      %v101 = vld [vmem:[%s100] sm:$0x1]
      %v102 = vadd.f32 %v98, %v101
      %s103 = sld [smem:[#allocation4 + $0x102]]
      %s104 = scalar_lea.vmem [#allocation5], %s103
      %v105 = vld [vmem:[%s104] sm:$0x1]
      %v106 = vadd.f32 %v102, %v105
      %s107 = sld [smem:[#allocation4 + $0x103]]
      %s108 = scalar_lea.vmem [#allocation5], %s107
      %v109 = vld [vmem:[%s108] sm:$0x1]
      %v110 = vadd.f32 %v106, %v109
      %111 = vst [vmem:[#allocation2 + $0x2] sm:$0x1] %v110
      %s112 = sld [smem:[#allocation4 + $0x180]]
      %s113 = scalar_lea.vmem [#allocation5], %s112
      %v114 = vld [vmem:[%s113] sm:$0x1]
      %v115 = vadd.f32 %v114, 0.0
      %s116 = sld [smem:[#allocation4 + $0x181]]
      %s117 = scalar_lea.vmem [#allocation5], %s116
      %v118 = vld [vmem:[%s117] sm:$0x1]
      %v119 = vadd.f32 %v115, %v118
      %s120 = sld [smem:[#allocation4 + $0x182]]
      %s121 = scalar_lea.vmem [#allocation5], %s120
      %v122 = vld [vmem:[%s121] sm:$0x1]
      %v123 = vadd.f32 %v119, %v122
      %s124 = sld [smem:[#allocation4 + $0x183]]
      %s125 = scalar_lea.vmem [#allocation5], %s124
      %v126 = vld [vmem:[%s125] sm:$0x1]
      %v127 = vadd.f32 %v123, %v126
      %128 = vst [vmem:[#allocation2 + $0x3] sm:$0x1] %v127
      %s129 = sld [smem:[#allocation4 + $0x200]]
      %s130 = scalar_lea.vmem [#allocation5], %s129
      %v131 = vld [vmem:[%s130] sm:$0x1]
      %v132 = vadd.f32 %v131, 0.0
      %s133 = sld [smem:[#allocation4 + $0x201]]
      %s134 = scalar_lea.vmem [#allocation5], %s133
      %v135 = vld [vmem:[%s134] sm:$0x1]
      %v136 = vadd.f32 %v132, %v135
      %s137 = sld [smem:[#allocation4 + $0x202]]
      %s138 = scalar_lea.vmem [#allocation5], %s137
      %v139 = vld [vmem:[%s138] sm:$0x1]
      %v140 = vadd.f32 %v136, %v139
      %s141 = sld [smem:[#allocation4 + $0x203]]
      %s142 = scalar_lea.vmem [#allocation5], %s141
      %v143 = vld [vmem:[%s142] sm:$0x1]
      %v144 = vadd.f32 %v140, %v143
      %145 = vst [vmem:[#allocation2 + $0x4] sm:$0x1] %v144
      %s146 = sld [smem:[#allocation4 + $0x280]]
      %s147 = scalar_lea.vmem [#allocation5], %s146
      %v148 = vld [vmem:[%s147] sm:$0x1]
      %v149 = vadd.f32 %v148, 0.0
      %s150 = sld [smem:[#allocation4 + $0x281]]
      %s151 = scalar_lea.vmem [#allocation5], %s150
      %v152 = vld [vmem:[%s151] sm:$0x1]
      %v153 = vadd.f32 %v149, %v152
      %s154 = sld [smem:[#allocation4 + $0x282]]
      %s155 = scalar_lea.vmem [#allocation5], %s154
      %v156 = vld [vmem:[%s155] sm:$0x1]
      %v157 = vadd.f32 %v153, %v156
      %s158 = sld [smem:[#allocation4 + $0x283]]
      %s159 = scalar_lea.vmem [#allocation5], %s158
      %v160 = vld [vmem:[%s159] sm:$0x1]
      %v161 = vadd.f32 %v157, %v160
      %162 = vst [vmem:[#allocation2 + $0x5] sm:$0x1] %v161
      %s163 = sld [smem:[#allocation4 + $0x300]]
      %s164 = scalar_lea.vmem [#allocation5], %s163
      %v165 = vld [vmem:[%s164] sm:$0x1]
      %v166 = vadd.f32 %v165, 0.0
      %s167 = sld [smem:[#allocation4 + $0x301]]
      %s168 = scalar_lea.vmem [#allocation5], %s167
      %v169 = vld [vmem:[%s168] sm:$0x1]
      %v170 = vadd.f32 %v166, %v169
      %s171 = sld [smem:[#allocation4 + $0x302]]
      %s172 = scalar_lea.vmem [#allocation5], %s171
      %v173 = vld [vmem:[%s172] sm:$0x1]
      %v174 = vadd.f32 %v170, %v173
      %s175 = sld [smem:[#allocation4 + $0x303]]
      %s176 = scalar_lea.vmem [#allocation5], %s175
      %v177 = vld [vmem:[%s176] sm:$0x1]
      %v178 = vadd.f32 %v174, %v177
      %179 = vst [vmem:[#allocation2 + $0x6] sm:$0x1] %v178
      %s180 = sld [smem:[#allocation4 + $0x380]]
      %s181 = scalar_lea.vmem [#allocation5], %s180
      %v182 = vld [vmem:[%s181] sm:$0x1]
      %v183 = vadd.f32 %v182, 0.0
      %s184 = sld [smem:[#allocation4 + $0x381]]
      %s185 = scalar_lea.vmem [#allocation5], %s184
      %v186 = vld [vmem:[%s185] sm:$0x1]
      %v187 = vadd.f32 %v183, %v186
      %s188 = sld [smem:[#allocation4 + $0x382]]
      %s189 = scalar_lea.vmem [#allocation5], %s188
      %v190 = vld [vmem:[%s189] sm:$0x1]
      %v191 = vadd.f32 %v187, %v190
      %s192 = sld [smem:[#allocation4 + $0x383]]
      %s193 = scalar_lea.vmem [#allocation5], %s192
      %v194 = vld [vmem:[%s193] sm:$0x1]
      %v195 = vadd.f32 %v191, %v194
      %196 = vst [vmem:[#allocation2 + $0x7] sm:$0x1] %v195
    $region25: #{tpu_custom_call.1} parent=1 // pred_fallthru
      _
    %v197 = vld [vmem:[#allocation2] sm:$0xff]
    %v198 = vld [vmem:[#allocation8] sm:$0xff]
    %v199 = vld [vmem:[#allocation8 + $0x8] sm:$0xff]
    %v200 = vld [vmem:[#allocation8 + $0x10] sm:$0xff]
    %v201 = vld [vmem:[#allocation8 + $0x18] sm:$0xff]
    %v202 = vld [vmem:[#allocation8 + $0x20] sm:$0xff]
    %v203 = vld [vmem:[#allocation8 + $0x28] sm:$0xff]
    %v204 = vld [vmem:[#allocation8 + $0x30] sm:$0xff]
    %v205 = vld [vmem:[#allocation8 + $0x38] sm:$0xff]
    %v206 = vld [vmem:[#allocation8 + $0x40] sm:$0xff]
    %v207 = vld [vmem:[#allocation8 + $0x48] sm:$0xff]
    %v208 = vld [vmem:[#allocation8 + $0x50] sm:$0xff]
    %v209 = vld [vmem:[#allocation8 + $0x58] sm:$0xff]
    %v210 = vld [vmem:[#allocation8 + $0x60] sm:$0xff]
    %v211 = vld [vmem:[#allocation8 + $0x68] sm:$0xff]
    %v212 = vld [vmem:[#allocation8 + $0x70] sm:$0xff]
    %v213 = vld [vmem:[#allocation8 + $0x78] sm:$0xff]
    %v214 = vld [vmem:[%s3] sm:$0x1]
    %v216 = vperm.slane %v214, 0
    %218 = vmatpush.msra.mxu0 %v213
    %219 = vmatpush.msra.mxu0 %v212
    %220 = vmatpush.msra.mxu0 %v211
    %221 = vmatpush.msra.mxu0 %v210
    %222 = vmatpush.msra.mxu0 %v209
    %223 = vmatpush.msra.mxu0 %v208
    %224 = vmatpush.msra.mxu0 %v207
    %225 = vmatpush.msra.mxu0 %v206
    %226 = vmatpush.msra.mxu0 %v205
    %227 = vmatpush.msra.mxu0 %v204
    %228 = vmatpush.msra.mxu0 %v203
    %229 = vmatpush.msra.mxu0 %v202
    %230 = vmatpush.msra.mxu0 %v201
    %231 = vmatpush.msra.mxu0 %v200
    %232 = vmatpush.msra.mxu0 %v199
    %233 = vmatpush.msra.mxu0 %v198
    %234 = vmatmul.f32.gmra.mxu0 %v197
    %v235 = vpop.f32.mrf.mxu0
    %v236 = vadd.f32 %v216, %v235
    %237 = vdwg.mxu0
    %238 = vst [vmem:[#allocation10] sm:$0xff] %v236
    // Predicated region
    $region26: #{tpu_custom_call.1} parent=1 // pred_check
      _
    $region27: #{tpu_custom_call.1} parent=1 // pred_check_branch
      %240 = sbr.rel (0) target = $region29
    $region28: #{tpu_custom_call.1} parent=1 // pred_region
      %242 = vsyncadd [#allocation7], 0
      %s244 = sshll.u32 [#allocation10], 4
      %s245 = int_to_ptr.vmem [resolvable:$true] %s244
      %s246 = sshll.u32 %s4, 4
      %s247 = int_to_ptr.hbm [resolvable:$true] %s246
      %249 = dma.vmem_to_hbm [thread:$0]  %s245, 128, %s247, [#allocation7]
    $region29: #{tpu_custom_call.1} parent=1 // pred_fallthru
      _
    // Predicated region
    $region30: #{tpu_custom_call.1} parent=1 // pred_check
      _
    $region31: #{tpu_custom_call.1} parent=1 // pred_check_branch
      %251 = sbr.rel (0) target = $region33
    $region32: #{tpu_custom_call.1} parent=1 // pred_region
      %253 = dma.done [#allocation7], 128
    $region33: #{tpu_custom_call.1} parent=1 // pred_fallthru
      _
    %254 = vsyncpa [#allocation6], 1
    %255 = vsyncpa [#allocation9], 1
    %256 = vsyncpa [#allocation7], 1

</llo_original>
